<compile_context>
chip_gen: v7x
topology: tpu7x:2x2x1
jax: 0.10.0
libtpu: 0.0.40
codegen_flags: <defaults>
</compile_context>

<pallas_src>
import functools

import jax
import jax.numpy as jnp
from jax.experimental import pallas as pl
from jax.experimental.pallas import tpu as pltpu

LANES = 128          # lane width
SUBLANES = 8         # sublanes per vreg
MAX_TILE_ROWS = 1024 # rows per grid step (1024*128*4B = 512 KiB per stream)


def _masked_sse_kernel(pc_ref, pf_ref, t_ref, out_ref, acc_c_ref, acc_f_ref):
    """Accumulate sum((pc-t)^2) and sum((pf-t)^2) over the inner grid axis."""
    j = pl.program_id(1)

    @pl.when(j == 0)
    def _():
        acc_c_ref[...] = jnp.zeros_like(acc_c_ref)
        acc_f_ref[...] = jnp.zeros_like(acc_f_ref)

    t = t_ref[...]
    dc = pc_ref[...] - t
    df = pf_ref[...] - t
    rows = dc.shape[0]
    # (rows,128) -> (rows//8, 8, 128) keeps the (8,128) vreg layout; the
    # axis-0 sum is a chain of elementwise vreg adds (VPU only, no XLU).
    acc_c_ref[...] += jnp.sum((dc * dc).reshape(rows // SUBLANES, SUBLANES, LANES),
                              axis=0)
    acc_f_ref[...] += jnp.sum((df * df).reshape(rows // SUBLANES, SUBLANES, LANES),
                              axis=0)

    @pl.when(j == pl.num_programs(1) - 1)
    def _():
        # Single lane-dense epilogue write of this split's partial sums.
        out_ref[0, 0] = acc_c_ref[...]
        out_ref[0, 1] = acc_f_ref[...]


@functools.partial(jax.jit, static_argnames=("coef",))
def color_loss(rgb_coarse, rgb_fine, rgbs, valid_mask, coef=1.0):
    """ColorLoss forward (instance_only=False), coarse + fine heads."""
    pc = rgb_coarse.reshape(-1, 3).astype(jnp.float32)
    pf = rgb_fine.reshape(-1, 3).astype(jnp.float32)
    tg = rgbs.reshape(-1, 3).astype(jnp.float32)
    n = tg.shape[0]
    m = valid_mask.reshape(-1, 1).astype(jnp.float32)   # (n,1), broadcasts to RGB

    total = n * 3
    rows = pl.cdiv(total, LANES)
    rows8 = pl.cdiv(rows, SUBLANES) * SUBLANES
    tile_rows = min(MAX_TILE_ROWS, rows8)
    n_tiles_min = pl.cdiv(rows8, tile_rows)
    num_splits = 2 if n_tiles_min >= 2 else 1            # megacore split on v7x
    tiles_per_split = pl.cdiv(n_tiles_min, num_splits)
    padded_rows = num_splits * tiles_per_split * tile_rows
    padded_len = padded_rows * LANES

    def prep(x):
        # cast + mask-fold + flatten + pad fuse into one pass per array.
        flat = (x * m).reshape(-1)
        flat = jnp.pad(flat, (0, padded_len - total))
        return flat.reshape(padded_rows, LANES)

    pc2, pf2, tg2 = prep(pc), prep(pf), prep(tg)

    data_spec = pl.BlockSpec(
        (tile_rows, LANES),
        lambda i, j: (i * tiles_per_split + j, 0))
    out_spec = pl.BlockSpec(
        (1, 2, SUBLANES, LANES),
        lambda i, j: (i, 0, 0, 0))

    partials = pl.pallas_call(
        _masked_sse_kernel,
        out_shape=jax.ShapeDtypeStruct((num_splits, 2, SUBLANES, LANES),
                                       jnp.float32),
        grid_spec=pltpu.PrefetchScalarGridSpec(
            num_scalar_prefetch=0,
            grid=(num_splits, tiles_per_split),
            in_specs=[data_spec, data_spec, data_spec],
            out_specs=out_spec,
            scratch_shapes=[pltpu.VMEM((SUBLANES, LANES), jnp.float32),
                            pltpu.VMEM((SUBLANES, LANES), jnp.float32)]),
        compiler_params=pltpu.CompilerParams(
            dimension_semantics=("parallel", "arbitrary")),
    )(pc2, pf2, tg2)

    sse_c = jnp.sum(partials[:, 0])
    sse_f = jnp.sum(partials[:, 1])
    # count == 3 * num_valid_rays == number of selected elements in the
    # PyTorch boolean-indexed mean.  count==0 -> NaN, matching PyTorch.
    count = 3.0 * jnp.sum(valid_mask.astype(jnp.float32))
    loss = (sse_c + sse_f) / count
    return coef * loss


def _reference(rgb_coarse, rgb_fine, rgbs, valid_mask, coef=1.0):
    tg = rgbs.reshape(-1, 3).astype(jnp.float32)
    m = jnp.broadcast_to(valid_mask.reshape(-1, 1).astype(jnp.float32), tg.shape)
    cnt = jnp.sum(m)
    lc = jnp.sum(m * (rgb_coarse.reshape(-1, 3).astype(jnp.float32) - tg) ** 2) / cnt
    lf = jnp.sum(m * (rgb_fine.reshape(-1, 3).astype(jnp.float32) - tg) ** 2) / cnt
    return coef * (lc + lf)


# TODO(synk): instance_only=True branch (instance_mask / instance_mask_weight
# weighting and the data-dependent `return None` when the mask is empty) is
# not implemented; only the default instance_only=False path is covered.

if __name__ == "__main__":
    key = jax.random.PRNGKey(0)

    def make_inputs(k, n):
        k1, k2, k3, k4 = jax.random.split(k, 4)
        return (jax.random.uniform(k1, (n, 3), dtype=jnp.float32),
                jax.random.uniform(k2, (n, 3), dtype=jnp.float32),
                jax.random.uniform(k3, (n, 3), dtype=jnp.float32),
                jax.random.uniform(k4, (n,)) > 0.3)

    # Small batch: single tile, single split (exercises padding of the tail).
    ka, kb = jax.random.split(key)
    rc, rf, rg, vm = make_inputs(ka, 300)
    out_small = jax.block_until_ready(color_loss(rc, rf, rg, vm, coef=1.0))
    ref_small = _reference(rc, rf, rg, vm, coef=1.0)
    assert jnp.allclose(out_small, ref_small, rtol=1e-5, atol=1e-6), \
        (out_small, ref_small)

    # Larger batch: exercises the multi-tile / two-split (megacore) path.
    rc, rf, rg, vm = make_inputs(kb, 70000)
    out_big = jax.block_until_ready(color_loss(rc, rf, rg, vm, coef=2.0))
    ref_big = _reference(rc, rf, rg, vm, coef=2.0)
    assert jnp.allclose(out_big, ref_big, rtol=1e-4, atol=1e-5), \
        (out_big, ref_big)

    print("KERNEL_OK")
</pallas_src>

<mosaic_0001>
module attributes {stable_mosaic.version = 11 : i64} {
  func.func @_masked_sse_kernel(%arg0: i32, %arg1: i32, %arg2: memref<8x128xf32, #tpu.memory_space<vmem>>, %arg3: memref<8x128xf32, #tpu.memory_space<vmem>>, %arg4: memref<8x128xf32, #tpu.memory_space<vmem>>, %arg5: memref<1x2x8x128xf32, #tpu.memory_space<vmem>>, %arg6: memref<8x128xf32, #tpu.memory_space<vmem>>, %arg7: memref<8x128xf32, #tpu.memory_space<vmem>>) attributes {dimension_semantics = [#tpu.dimension_semantics<parallel>, #tpu.dimension_semantics<arbitrary>], iteration_bounds = array<i64: 1, 1>, scalar_prefetch = 0 : i64, scratch_operands = 2 : i64, tpu.core_type = #tpu.core_type<tc>, window_params = [{transform_indices = @transform_0, window_bounds = array<i64: 8, 128>}, {transform_indices = @transform_1, window_bounds = array<i64: 8, 128>}, {transform_indices = @transform_2, window_bounds = array<i64: 8, 128>}, {transform_indices = @transform_3, window_bounds = array<i64: 1, 2, 8, 128>}]} {
    %c0_i32 = arith.constant 0 : i32
    %0 = arith.cmpi eq, %arg1, %c0_i32 : i32
    %1 = arith.extui %0 : i1 to i32
    %c0_i32_0 = arith.constant 0 : i32
    %2 = arith.cmpi ne, %1, %c0_i32_0 : i32
    scf.if %2 {
      %cst_17 = arith.constant 0.000000e+00 : f32
      %23 = vector.broadcast %cst_17 : f32 to vector<8x128xf32>
      %c0_18 = arith.constant 0 : index
      %c0_19 = arith.constant 0 : index
      %24 = vector.load %arg6[%c0_18, %c0_19] : memref<8x128xf32, #tpu.memory_space<vmem>>, vector<8x128xf32>
      tpu.vector_store %arg6[%c0_18, %c0_19], %23 {strides = array<i32>} : memref<8x128xf32, #tpu.memory_space<vmem>>, vector<8x128xf32>,
      %cst_20 = arith.constant 0.000000e+00 : f32
      %25 = vector.broadcast %cst_20 : f32 to vector<8x128xf32>
      %c0_21 = arith.constant 0 : index
      %c0_22 = arith.constant 0 : index
      %26 = vector.load %arg7[%c0_21, %c0_22] : memref<8x128xf32, #tpu.memory_space<vmem>>, vector<8x128xf32>
      tpu.vector_store %arg7[%c0_21, %c0_22], %25 {strides = array<i32>} : memref<8x128xf32, #tpu.memory_space<vmem>>, vector<8x128xf32>,
    } else {
    }
    %c0 = arith.constant 0 : index
    %c0_1 = arith.constant 0 : index
    %3 = vector.load %arg4[%c0, %c0_1] : memref<8x128xf32, #tpu.memory_space<vmem>>, vector<8x128xf32>
    %c0_2 = arith.constant 0 : index
    %c0_3 = arith.constant 0 : index
    %4 = vector.load %arg2[%c0_2, %c0_3] : memref<8x128xf32, #tpu.memory_space<vmem>>, vector<8x128xf32>
    %5 = arith.subf %4, %3 : vector<8x128xf32>
    %c0_4 = arith.constant 0 : index
    %c0_5 = arith.constant 0 : index
    %6 = vector.load %arg3[%c0_4, %c0_5] : memref<8x128xf32, #tpu.memory_space<vmem>>, vector<8x128xf32>
    %7 = arith.subf %6, %3 : vector<8x128xf32>
    %c0_6 = arith.constant 0 : index
    %c0_7 = arith.constant 0 : index
    %8 = vector.load %arg6[%c0_6, %c0_7] : memref<8x128xf32, #tpu.memory_space<vmem>>, vector<8x128xf32>
    %9 = arith.mulf %5, %5 : vector<8x128xf32>
    %10 = vector.shape_cast %9 : vector<8x128xf32> to vector<1x8x128xf32>
    %cst = arith.constant dense<0.000000e+00> : vector<8x128xf32>
    %11 = vector.multi_reduction <add>, %10, %cst [0] : vector<1x8x128xf32> to vector<8x128xf32>
    %12 = arith.addf %8, %11 : vector<8x128xf32>
    %c0_8 = arith.constant 0 : index
    %c0_9 = arith.constant 0 : index
    %13 = vector.load %arg6[%c0_8, %c0_9] : memref<8x128xf32, #tpu.memory_space<vmem>>, vector<8x128xf32>
    tpu.vector_store %arg6[%c0_8, %c0_9], %12 {strides = array<i32>} : memref<8x128xf32, #tpu.memory_space<vmem>>, vector<8x128xf32>,
    %c0_10 = arith.constant 0 : index
    %c0_11 = arith.constant 0 : index
    %14 = vector.load %arg7[%c0_10, %c0_11] : memref<8x128xf32, #tpu.memory_space<vmem>>, vector<8x128xf32>
    %15 = arith.mulf %7, %7 : vector<8x128xf32>
    %16 = vector.shape_cast %15 : vector<8x128xf32> to vector<1x8x128xf32>
    %cst_12 = arith.constant dense<0.000000e+00> : vector<8x128xf32>
    %17 = vector.multi_reduction <add>, %16, %cst_12 [0] : vector<1x8x128xf32> to vector<8x128xf32>
    %18 = arith.addf %14, %17 : vector<8x128xf32>
    %c0_13 = arith.constant 0 : index
    %c0_14 = arith.constant 0 : index
    %19 = vector.load %arg7[%c0_13, %c0_14] : memref<8x128xf32, #tpu.memory_space<vmem>>, vector<8x128xf32>
    tpu.vector_store %arg7[%c0_13, %c0_14], %18 {strides = array<i32>} : memref<8x128xf32, #tpu.memory_space<vmem>>, vector<8x128xf32>,
    %c0_i32_15 = arith.constant 0 : i32
    %20 = arith.cmpi eq, %arg1, %c0_i32_15 : i32
    %21 = arith.extui %20 : i1 to i32
    %c0_i32_16 = arith.constant 0 : i32
    %22 = arith.cmpi ne, %21, %c0_i32_16 : i32
    scf.if %22 {
      %c0_17 = arith.constant 0 : index
      %c0_18 = arith.constant 0 : index
      %23 = vector.load %arg6[%c0_17, %c0_18] : memref<8x128xf32, #tpu.memory_space<vmem>>, vector<8x128xf32>
      %c0_19 = arith.constant 0 : index
      %c0_20 = arith.constant 0 : index
      %c0_21 = arith.constant 0 : index
      %c0_22 = arith.constant 0 : index
      %24 = vector.load %arg5[%c0_19, %c0_20, %c0_21, %c0_22] : memref<1x2x8x128xf32, #tpu.memory_space<vmem>>, vector<1x1x8x128xf32>
      %25 = vector.shape_cast %24 : vector<1x1x8x128xf32> to vector<8x128xf32>
      %26 = vector.shape_cast %23 : vector<8x128xf32> to vector<1x1x8x128xf32>
      tpu.vector_store %arg5[%c0_19, %c0_20, %c0_21, %c0_22], %26 {strides = array<i32>} : memref<1x2x8x128xf32, #tpu.memory_space<vmem>>, vector<1x1x8x128xf32>,
      %c0_23 = arith.constant 0 : index
      %c0_24 = arith.constant 0 : index
      %27 = vector.load %arg7[%c0_23, %c0_24] : memref<8x128xf32, #tpu.memory_space<vmem>>, vector<8x128xf32>
      %c0_25 = arith.constant 0 : index
      %c1 = arith.constant 1 : index
      %c0_26 = arith.constant 0 : index
      %c0_27 = arith.constant 0 : index
      %28 = vector.load %arg5[%c0_25, %c1, %c0_26, %c0_27] : memref<1x2x8x128xf32, #tpu.memory_space<vmem>>, vector<1x1x8x128xf32>
      %29 = vector.shape_cast %28 : vector<1x1x8x128xf32> to vector<8x128xf32>
      %30 = vector.shape_cast %27 : vector<8x128xf32> to vector<1x1x8x128xf32>
      tpu.vector_store %arg5[%c0_25, %c1, %c0_26, %c0_27], %30 {strides = array<i32>} : memref<1x2x8x128xf32, #tpu.memory_space<vmem>>, vector<1x1x8x128xf32>,
    } else {
    }
    return
  }
  func.func @transform_0(%arg0: i32, %arg1: i32) -> (i32, i32) {
    %c1_i32 = arith.constant 1 : i32
    %0 = arith.muli %arg0, %c1_i32 : i32
    %1 = arith.addi %0, %arg1 : i32
    %c0_i32 = arith.constant 0 : i32
    %c0_i32_0 = arith.constant 0 : i32
    return %1, %c0_i32 : i32, i32
  }
  func.func @transform_1(%arg0: i32, %arg1: i32) -> (i32, i32) {
    %c1_i32 = arith.constant 1 : i32
    %0 = arith.muli %arg0, %c1_i32 : i32
    %1 = arith.addi %0, %arg1 : i32
    %c0_i32 = arith.constant 0 : i32
    %c0_i32_0 = arith.constant 0 : i32
    return %1, %c0_i32 : i32, i32
  }
  func.func @transform_2(%arg0: i32, %arg1: i32) -> (i32, i32) {
    %c1_i32 = arith.constant 1 : i32
    %0 = arith.muli %arg0, %c1_i32 : i32
    %1 = arith.addi %0, %arg1 : i32
    %c0_i32 = arith.constant 0 : i32
    %c0_i32_0 = arith.constant 0 : i32
    return %1, %c0_i32 : i32, i32
  }
  func.func @transform_3(%arg0: i32, %arg1: i32) -> (i32, i32, i32, i32) {
    %c0_i32 = arith.constant 0 : i32
    %c0_i32_0 = arith.constant 0 : i32
    %c0_i32_1 = arith.constant 0 : i32
    %c0_i32_2 = arith.constant 0 : i32
    return %arg0, %c0_i32, %c0_i32_0, %c0_i32_1 : i32, i32, i32, i32
  }
}

</mosaic_0001>

<llo_original>
// kernel: color_loss.1
$region0: #{color_loss.1}
  #allocation0 [shape = 'u32[]', space=smem, size = 0x4, offset = 0x4, fixed_abs, tag = 'smem constant byte address 0x4 - core index']
  #allocation1 [shape = 'u32[144,128]{1,0:T(1,128)}', space=vmem, size = 0x12000, scoped, tag = 'internal scratch']
  #allocation2 [shape = 'f32[8,128]{1,0:T(8,128)}', space=vmem, size = 0x1000, scoped, tag = 'scratch operand']
  #allocation3 [shape = 'f32[8,128]{1,0:T(8,128)}', space=vmem, size = 0x1000, scoped, tag = 'scratch operand']
  %s0 = inlined_call_operand.vmem [shape: f32[8,128], index: 0, kind: input, shape index: {}]
  %s1 = inlined_call_operand.vmem [shape: f32[8,128], index: 1, kind: input, shape index: {}]
  %s2 = inlined_call_operand.vmem [shape: f32[8,128], index: 2, kind: input, shape index: {}]
  %s3 = inlined_call_operand.vmem [shape: f32[1,2,8,128], index: 3, kind: output, shape index: {}]
  %s4 = sld [smem:[#allocation0]]
  $region30: #{color_loss.1} parent=0
    _
  %s6 = ssub.s32 1, %s4
  %s7 = scalar_select 0, %s6, %s4
  // Predicated region
  $region2: #{color_loss.1} parent=0 // pred_check
    _
  $region3: #{color_loss.1} parent=0 // pred_check_branch
    %9 = sbr.rel (0) target = $region5
  $region4: #{color_loss.1} parent=0 // pred_region
    %s10 = sadd.s32 0, 0
    %p11 = scmp.lt.s32.totalorder %s10, 0
    %s12 = scalar_select %p11, %s10, 0
    %s13 = smul.addr %s12, 8
    %s14 = scalar_lea.vmem %s0, %s13
    %s15 = sadd.s32 0, 0
  $region5: #{color_loss.1} parent=0 // pred_fallthru
    _
  // Predicated region
  $region6: #{color_loss.1} parent=0 // pred_check
    _
  $region7: #{color_loss.1} parent=0 // pred_check_branch
    %17 = sbr.rel (0) target = $region9
  $region8: #{color_loss.1} parent=0 // pred_region
    %s18 = sadd.s32 0, 0
    %p19 = scmp.lt.s32.totalorder %s18, 0
    %s20 = scalar_select %p19, %s18, 0
    %s21 = smul.addr %s20, 8
    %s22 = scalar_lea.vmem %s1, %s21
    %s23 = sadd.s32 0, 0
  $region9: #{color_loss.1} parent=0 // pred_fallthru
    _
  // Predicated region
  $region10: #{color_loss.1} parent=0 // pred_check
    _
  $region11: #{color_loss.1} parent=0 // pred_check_branch
    %25 = sbr.rel (0) target = $region13
  $region12: #{color_loss.1} parent=0 // pred_region
    %s26 = sadd.s32 0, 0
    %p27 = scmp.lt.s32.totalorder %s26, 0
    %s28 = scalar_select %p27, %s26, 0
    %s29 = smul.addr %s28, 8
    %s30 = scalar_lea.vmem %s2, %s29
    %s31 = sadd.s32 0, 0
  $region13: #{color_loss.1} parent=0 // pred_fallthru
    _
  %s32 = sadd.s32 0, 0
  %p33 = scmp.lt.s32.totalorder %s32, 0
  %s34 = scalar_select %p33, %s32, 0
  %s35 = smul.addr %s34, 8
  %s36 = scalar_lea.vmem %s0, %s35
  %s37 = sadd.s32 0, 0
  %p38 = scmp.lt.s32.totalorder %s37, 0
  %s39 = scalar_select %p38, %s37, 0
  %s40 = smul.addr %s39, 8
  %s41 = scalar_lea.vmem %s1, %s40
  %s42 = sadd.s32 0, 0
  %p43 = scmp.lt.s32.totalorder %s42, 0
  %s44 = scalar_select %p43, %s42, 0
  %s45 = smul.addr %s44, 8
  %s46 = scalar_lea.vmem %s2, %s45
  %s47 = sadd.s32 0, 0
  %p48 = scmp.lt.s32.totalorder %s47, 0
  %s49 = scalar_select %p48, %s47, 0
  %s50 = smul.addr %s49, 8
  %s51 = scalar_lea.vmem %s0, %s50
  %s52 = sadd.s32 0, 0
  %s53 = sadd.s32 0, 0
  %p54 = scmp.lt.s32.totalorder %s53, 0
  %s55 = scalar_select %p54, %s53, 0
  %s56 = smul.addr %s55, 8
  %s57 = scalar_lea.vmem %s1, %s56
  %s58 = sadd.s32 0, 0
  %s59 = sadd.s32 0, 0
  %p60 = scmp.lt.s32.totalorder %s59, 0
  %s61 = scalar_select %p60, %s59, 0
  %s62 = smul.addr %s61, 8
  %s63 = scalar_lea.vmem %s2, %s62
  %s64 = sadd.s32 0, 0
  %p65 = scmp.eq.s32.totalorder 0, 0
  // Predicated region
  $region14: #{color_loss.1} parent=0 // pred_check
    %p66 = pneg %p65
  $region15: #{color_loss.1} parent=0 // pred_check_branch
    %68 = sbr.rel (%p66) target = $region17
  $region16: #{color_loss.1} parent=0 // pred_region
    %69 = vst [vmem:[#allocation2] sm:$0xff] 0.0
    %70 = vst [vmem:[#allocation3] sm:$0xff] 0.0
  $region17: #{color_loss.1} parent=0 // pred_fallthru
    _
  %v71 = vld [vmem:[%s63] sm:$0xff]
  %v72 = vld [vmem:[%s51] sm:$0xff]
  %v73 = vsub.f32 %v72, %v71
  %v74 = vld [vmem:[%s57] sm:$0xff]
  %v75 = vsub.f32 %v74, %v71
  %v76 = vld [vmem:[#allocation2] sm:$0xff]
  %v77 = vmul.f32 %v73, %v73
  %v78 = vadd.f32 %v77, 0.0
  %v79 = vadd.f32 %v76, %v78
  %80 = vst [vmem:[#allocation2] sm:$0xff] %v79
  %v81 = vld [vmem:[#allocation3] sm:$0xff]
  %v82 = vmul.f32 %v75, %v75
  %v83 = vadd.f32 %v82, 0.0
  %v84 = vadd.f32 %v81, %v83
  %85 = vst [vmem:[#allocation3] sm:$0xff] %v84
  // Predicated region
  $region18: #{color_loss.1} parent=0 // pred_check
    %p86 = pneg %p65
  $region19: #{color_loss.1} parent=0 // pred_check_branch
    %88 = sbr.rel (%p86) target = $region21
  $region20: #{color_loss.1} parent=0 // pred_region
    %v89 = vld [vmem:[#allocation2] sm:$0xff]
    %90 = vst [vmem:[%s3] sm:$0xff] %v89
    %v91 = vld [vmem:[#allocation3] sm:$0xff]
    %s92 = scalar_lea.vmem %s3, 8
    %93 = vst [vmem:[%s92] sm:$0xff] %v91
  $region21: #{color_loss.1} parent=0 // pred_fallthru
    _
  // Predicated region
  $region22: #{color_loss.1} parent=0 // pred_check
    _
  $region23: #{color_loss.1} parent=0 // pred_check_branch
    %95 = sbr.rel (0) target = $region25
  $region24: #{color_loss.1} parent=0 // pred_region
    _
  $region25: #{color_loss.1} parent=0 // pred_fallthru
    _
  // Predicated region
  $region26: #{color_loss.1} parent=0 // pred_check
    _
  $region27: #{color_loss.1} parent=0 // pred_check_branch
    %97 = sbr.rel (0) target = $region29
  $region28: #{color_loss.1} parent=0 // pred_region
    _
  $region29: #{color_loss.1} parent=0 // pred_fallthru
    _

</llo_original>
